<compile_context>
chip_gen: v5e
topology: v5e:2x2
jax: 0.10.0
libtpu: 0.0.40
codegen_flags: <defaults>
</compile_context>

<pallas_src>
import functools

import jax
import jax.numpy as jnp
from jax import lax
from jax.experimental import pallas as pl
from jax.experimental.pallas import tpu as pltpu


def _se_block_kernel(x_ref, w1_ref, b1_ref, w2_ref, b2_ref, o_ref, acc_ref,
                     *, hw_total, tile_hw):
    # x_ref:  (tile_n, C, tile_hw)   input activations (flattened spatial)
    # w1_ref: (hidden, C)            PyTorch nn.Linear weight (out, in)
    # b1_ref: (1, hidden)
    # w2_ref: (C, hidden)            PyTorch nn.Linear weight (out, in)
    # b2_ref: (1, C)
    # o_ref:  (tile_n, C)            sigmoid gates
    # acc_ref:(tile_n, C) f32        running spatial sum (VMEM scratch)
    hw_step = pl.program_id(1)

    @pl.when(hw_step == 0)
    def _init():
        acc_ref[...] = jnp.zeros_like(acc_ref)

    # Accumulate the spatial sum in float32 regardless of input dtype.
    x = x_ref[...].astype(jnp.float32)

    if hw_total % tile_hw != 0:
        # Last spatial tile is partial: mask out-of-range lanes before summing.
        lane = lax.broadcasted_iota(jnp.int32, x.shape, dimension=x.ndim - 1)
        valid = (hw_step * tile_hw + lane) < hw_total
        x = jnp.where(valid, x, 0.0)

    acc_ref[...] += jnp.sum(x, axis=-1)  # (tile_n, C)

    @pl.when(hw_step == pl.num_programs(1) - 1)
    def _finalize():
        pooled = acc_ref[...] * (1.0 / hw_total)  # mean over H*W, f32

        # Linear 1 + Swish: contract in_features dim of both operands so the
        # PyTorch (out_features, in_features) weight layout is used directly.
        h = lax.dot_general(
            pooled, w1_ref[...],
            dimension_numbers=(((1,), (1,)), ((), ())),
            preferred_element_type=jnp.float32) + b1_ref[...]
        h = h * jax.nn.sigmoid(h)

        # Linear 2 + Sigmoid.
        y = lax.dot_general(
            h, w2_ref[...],
            dimension_numbers=(((1,), (1,)), ((), ())),
            preferred_element_type=jnp.float32) + b2_ref[...]
        o_ref[...] = jax.nn.sigmoid(y).astype(o_ref.dtype)


def se_block(x, w1, b1, w2, b2, *, tile_bytes_budget=8 * 1024 * 1024):
    """SEBlock forward.

    x : (N, C, H, W)
    w1: (C*r, C), b1: (C*r,)   -- PyTorch nn.Linear(in_c, in_c*r) params
    w2: (C, C*r), b2: (C,)     -- PyTorch nn.Linear(in_c*r, in_c) params
    Returns gates of shape (N, C, 1, 1).
    """
    N, C, H, W = x.shape
    hidden = w1.shape[0]
    HW = H * W

    # Free reshape: NCHW is contiguous, so (N, C, H*W) is just a view.
    x_flat = x.reshape(N, C, HW)

    # Batch tile: multiple of 8 (sublane) or the full batch if it is small.
    tile_n = N if N <= 8 else 8

    # Spatial tile: lane-dense (multiple of 128) and sized so the f32,
    # double-buffered x tile stays within the budget (fits v7x's 64 MiB VMEM).
    max_hw = max(128, (tile_bytes_budget // (2 * tile_n * C * 4)) // 128 * 128)
    tile_hw = HW if HW <= max_hw else max_hw

    grid = (pl.cdiv(N, tile_n), pl.cdiv(HW, tile_hw))

    kernel = functools.partial(_se_block_kernel, hw_total=HW, tile_hw=tile_hw)

    out = pl.pallas_call(
        kernel,
        out_shape=jax.ShapeDtypeStruct((N, C), x.dtype),
        grid_spec=pltpu.PrefetchScalarGridSpec(
            num_scalar_prefetch=0,
            grid=grid,
            in_specs=[
                # x: tiled over batch and spatial; auto double-buffered.
                pl.BlockSpec((tile_n, C, tile_hw), lambda n, s: (n, 0, s)),
                # Tiny weights/biases: resident (same block every step).
                pl.BlockSpec((hidden, C), lambda n, s: (0, 0)),
                pl.BlockSpec((1, hidden), lambda n, s: (0, 0)),
                pl.BlockSpec((C, hidden), lambda n, s: (0, 0)),
                pl.BlockSpec((1, C), lambda n, s: (0, 0)),
            ],
            # Output block depends only on the batch index -> stays resident
            # across the spatial reduction axis; written in the finalize step.
            out_specs=pl.BlockSpec((tile_n, C), lambda n, s: (n, 0)),
            scratch_shapes=[pltpu.VMEM((tile_n, C), jnp.float32)],
        ),
        compiler_params=pltpu.CompilerParams(
            dimension_semantics=("parallel", "arbitrary"),
            vmem_limit_bytes=32 * 1024 * 1024,
        ),
    )(x_flat, w1, b1.reshape(1, hidden), w2, b2.reshape(1, C))

    return out.reshape(N, C, 1, 1)


if __name__ == "__main__":
    # Small deterministic setup consistent with SEBlock(in_c=4, r=4).
    N, C, H, W, r = 2, 4, 16, 16, 4
    hidden = C * r

    key = jax.random.PRNGKey(0)
    kx, kw1, kb1, kw2, kb2 = jax.random.split(key, 5)

    x = jax.random.normal(kx, (N, C, H, W), dtype=jnp.float32)
    # nn.Linear(in_c, in_c*r): weight (hidden, C), bias (hidden,)
    w1 = jax.random.normal(kw1, (hidden, C), dtype=jnp.float32) * 0.1
    b1 = jax.random.normal(kb1, (hidden,), dtype=jnp.float32) * 0.1
    # nn.Linear(in_c*r, in_c): weight (C, hidden), bias (C,)
    w2 = jax.random.normal(kw2, (C, hidden), dtype=jnp.float32) * 0.1
    b2 = jax.random.normal(kb2, (C,), dtype=jnp.float32) * 0.1

    y = se_block(x, w1, b1, w2, b2)
    jax.block_until_ready(y)

    # Pure-JAX reference check (same math, no Pallas).
    pooled = jnp.mean(x, axis=(2, 3))
    h = pooled @ w1.T + b1
    h = h * jax.nn.sigmoid(h)
    ref = jax.nn.sigmoid(h @ w2.T + b2).reshape(N, C, 1, 1)
    assert y.shape == (N, C, 1, 1)
    assert jnp.allclose(y, ref, atol=1e-5, rtol=1e-5)

    print("KERNEL_OK")
</pallas_src>

<mosaic_0001>
module attributes {stable_mosaic.version = 11 : i64} {
  func.func @_se_block_kernel(%arg0: i32, %arg1: i32, %arg2: memref<2x4x256xf32, #tpu.memory_space<vmem>>, %arg3: memref<16x4xf32, #tpu.memory_space<vmem>>, %arg4: memref<1x16xf32, #tpu.memory_space<vmem>>, %arg5: memref<4x16xf32, #tpu.memory_space<vmem>>, %arg6: memref<1x4xf32, #tpu.memory_space<vmem>>, %arg7: memref<2x4xf32, #tpu.memory_space<vmem>>, %arg8: memref<2x4xf32, #tpu.memory_space<vmem>>) attributes {dimension_semantics = [#tpu.dimension_semantics<parallel>, #tpu.dimension_semantics<arbitrary>], iteration_bounds = array<i64: 1, 1>, scalar_prefetch = 0 : i64, scratch_operands = 1 : i64, tpu.core_type = #tpu.core_type<tc>, window_params = [{transform_indices = @transform_0, window_bounds = array<i64: 2, 4, 256>}, {pipeline_mode = #tpu.pipeline_mode<synchronous>, transform_indices = @transform_1, window_bounds = array<i64: 16, 4>}, {pipeline_mode = #tpu.pipeline_mode<synchronous>, transform_indices = @transform_2, window_bounds = array<i64: 1, 16>}, {pipeline_mode = #tpu.pipeline_mode<synchronous>, transform_indices = @transform_3, window_bounds = array<i64: 4, 16>}, {pipeline_mode = #tpu.pipeline_mode<synchronous>, transform_indices = @transform_4, window_bounds = array<i64: 1, 4>}, {transform_indices = @transform_5, window_bounds = array<i64: 2, 4>}]} {
    %c0_i32 = arith.constant 0 : i32
    %0 = arith.cmpi eq, %arg1, %c0_i32 : i32
    %1 = arith.extui %0 : i1 to i32
    %c0_i32_0 = arith.constant 0 : i32
    %2 = arith.cmpi ne, %1, %c0_i32_0 : i32
    scf.if %2 {
      %cst_9 = arith.constant 0.000000e+00 : f32
      %11 = vector.broadcast %cst_9 : f32 to vector<2x4xf32>
      %c0_10 = arith.constant 0 : index
      %c0_11 = arith.constant 0 : index
      %12 = vector.load %arg8[%c0_10, %c0_11] : memref<2x4xf32, #tpu.memory_space<vmem>>, vector<2x4xf32>
      tpu.vector_store %arg8[%c0_10, %c0_11], %11 {strides = array<i32>} : memref<2x4xf32, #tpu.memory_space<vmem>>, vector<2x4xf32>,
    } else {
    }
    %c0 = arith.constant 0 : index
    %c0_1 = arith.constant 0 : index
    %c0_2 = arith.constant 0 : index
    %3 = vector.load %arg2[%c0, %c0_1, %c0_2] : memref<2x4x256xf32, #tpu.memory_space<vmem>>, vector<2x4x256xf32>
    %c0_3 = arith.constant 0 : index
    %c0_4 = arith.constant 0 : index
    %4 = vector.load %arg8[%c0_3, %c0_4] : memref<2x4xf32, #tpu.memory_space<vmem>>, vector<2x4xf32>
    %cst = arith.constant dense<0.000000e+00> : vector<2x4xf32>
    %5 = vector.multi_reduction <add>, %3, %cst [2] : vector<2x4x256xf32> to vector<2x4xf32>
    %6 = arith.addf %4, %5 : vector<2x4xf32>
    %c0_5 = arith.constant 0 : index
    %c0_6 = arith.constant 0 : index
    %7 = vector.load %arg8[%c0_5, %c0_6] : memref<2x4xf32, #tpu.memory_space<vmem>>, vector<2x4xf32>
    tpu.vector_store %arg8[%c0_5, %c0_6], %6 {strides = array<i32>} : memref<2x4xf32, #tpu.memory_space<vmem>>, vector<2x4xf32>,
    %c0_i32_7 = arith.constant 0 : i32
    %8 = arith.cmpi eq, %arg1, %c0_i32_7 : i32
    %9 = arith.extui %8 : i1 to i32
    %c0_i32_8 = arith.constant 0 : i32
    %10 = arith.cmpi ne, %9, %c0_i32_8 : i32
    scf.if %10 {
      %c0_9 = arith.constant 0 : index
      %c0_10 = arith.constant 0 : index
      %11 = vector.load %arg8[%c0_9, %c0_10] : memref<2x4xf32, #tpu.memory_space<vmem>>, vector<2x4xf32>
      %cst_11 = arith.constant 3.906250e-03 : f32
      %12 = vector.broadcast %cst_11 : f32 to vector<2x4xf32>
      %13 = arith.mulf %11, %12 : vector<2x4xf32>
      %c0_12 = arith.constant 0 : index
      %c0_13 = arith.constant 0 : index
      %14 = vector.load %arg3[%c0_12, %c0_13] : memref<16x4xf32, #tpu.memory_space<vmem>>, vector<16x4xf32>
      %cst_14 = arith.constant dense<0.000000e+00> : vector<2x16xf32>
      %15 = tpu.matmul %13, %14, %cst_14 {dimension_numbers = #tpu.dot_dimension_numbers<[1], [1], [0], [0], [0, 0, 1, 0], [], []>} : vector<2x4xf32>, vector<16x4xf32>, vector<2x16xf32> -> vector<2x16xf32>
      %c0_15 = arith.constant 0 : index
      %c0_16 = arith.constant 0 : index
      %16 = vector.load %arg4[%c0_15, %c0_16] : memref<1x16xf32, #tpu.memory_space<vmem>>, vector<1x16xf32>
      %17 = vector.broadcast %16 : vector<1x16xf32> to vector<2x16xf32>
      %18 = arith.addf %15, %17 : vector<2x16xf32>
      %19 = arith.negf %18 : vector<2x16xf32>
      %20 = math.exp %19 : vector<2x16xf32>
      %cst_17 = arith.constant 1.000000e+00 : f32
      %21 = vector.broadcast %cst_17 : f32 to vector<2x16xf32>
      %22 = arith.addf %21, %20 : vector<2x16xf32>
      %23 = arith.divf %21, %22 : vector<2x16xf32>
      %24 = arith.mulf %18, %23 : vector<2x16xf32>
      %c0_18 = arith.constant 0 : index
      %c0_19 = arith.constant 0 : index
      %25 = vector.load %arg5[%c0_18, %c0_19] : memref<4x16xf32, #tpu.memory_space<vmem>>, vector<4x16xf32>
      %cst_20 = arith.constant dense<0.000000e+00> : vector<2x4xf32>
      %26 = tpu.matmul %24, %25, %cst_20 {dimension_numbers = #tpu.dot_dimension_numbers<[1], [1], [0], [0], [0, 0, 1, 0], [], []>} : vector<2x16xf32>, vector<4x16xf32>, vector<2x4xf32> -> vector<2x4xf32>
      %c0_21 = arith.constant 0 : index
      %c0_22 = arith.constant 0 : index
      %27 = vector.load %arg6[%c0_21, %c0_22] : memref<1x4xf32, #tpu.memory_space<vmem>>, vector<1x4xf32>
      %28 = vector.broadcast %27 : vector<1x4xf32> to vector<2x4xf32>
      %29 = arith.addf %26, %28 : vector<2x4xf32>
      %30 = arith.negf %29 : vector<2x4xf32>
      %31 = math.exp %30 : vector<2x4xf32>
      %cst_23 = arith.constant 1.000000e+00 : f32
      %32 = vector.broadcast %cst_23 : f32 to vector<2x4xf32>
      %33 = arith.addf %32, %31 : vector<2x4xf32>
      %34 = arith.divf %32, %33 : vector<2x4xf32>
      %c0_24 = arith.constant 0 : index
      %c0_25 = arith.constant 0 : index
      %35 = vector.load %arg7[%c0_24, %c0_25] : memref<2x4xf32, #tpu.memory_space<vmem>>, vector<2x4xf32>
      tpu.vector_store %arg7[%c0_24, %c0_25], %34 {strides = array<i32>} : memref<2x4xf32, #tpu.memory_space<vmem>>, vector<2x4xf32>,
    } else {
    }
    return
  }
  func.func @transform_0(%arg0: i32, %arg1: i32) -> (i32, i32, i32) {
    %c0_i32 = arith.constant 0 : i32
    %c0_i32_0 = arith.constant 0 : i32
    return %arg0, %c0_i32, %arg1 : i32, i32, i32
  }
  func.func @transform_1(%arg0: i32, %arg1: i32) -> (i32, i32) {
    %c0_i32 = arith.constant 0 : i32
    %c0_i32_0 = arith.constant 0 : i32
    %c0_i32_1 = arith.constant 0 : i32
    return %c0_i32, %c0_i32_0 : i32, i32
  }
  func.func @transform_2(%arg0: i32, %arg1: i32) -> (i32, i32) {
    %c0_i32 = arith.constant 0 : i32
    %c0_i32_0 = arith.constant 0 : i32
    %c0_i32_1 = arith.constant 0 : i32
    return %c0_i32, %c0_i32_0 : i32, i32
  }
  func.func @transform_3(%arg0: i32, %arg1: i32) -> (i32, i32) {
    %c0_i32 = arith.constant 0 : i32
    %c0_i32_0 = arith.constant 0 : i32
    %c0_i32_1 = arith.constant 0 : i32
    return %c0_i32, %c0_i32_0 : i32, i32
  }
  func.func @transform_4(%arg0: i32, %arg1: i32) -> (i32, i32) {
    %c0_i32 = arith.constant 0 : i32
    %c0_i32_0 = arith.constant 0 : i32
    %c0_i32_1 = arith.constant 0 : i32
    return %c0_i32, %c0_i32_0 : i32, i32
  }
  func.func @transform_5(%arg0: i32, %arg1: i32) -> (i32, i32) {
    %c0_i32 = arith.constant 0 : i32
    %c0_i32_0 = arith.constant 0 : i32
    return %arg0, %c0_i32 : i32, i32
  }
}

</mosaic_0001>

<llo_original>
// kernel: tpu_custom_call.1
$region0: #{tpu_custom_call.1}
  #allocation0 [shape = 'u32[]', space=smem, size = 0x4, offset = 0x4, fixed_abs, tag = 'smem constant byte address 0x4 - core index']
  #allocation1 [shape = 'u32[72,128]{1,0:T(1,128)}', space=vmem, size = 0x9000, scoped, tag = 'internal scratch']
  #allocation2 [shape = 'f32[2,4]{1,0:T(2,128)}', space=vmem, size = 0x400, scoped, tag = 'scratch operand']
  %s0 = inlined_call_operand.vmem [shape: f32[2,4,256], index: 0, kind: input, shape index: {}]
  %s1 = inlined_call_operand.vmem [shape: f32[16,4], index: 1, kind: input, shape index: {}]
  %s2 = inlined_call_operand.vmem [shape: f32[1,16], index: 2, kind: input, shape index: {}]
  %s3 = inlined_call_operand.vmem [shape: f32[4,16], index: 3, kind: input, shape index: {}]
  %s4 = inlined_call_operand.vmem [shape: f32[1,4], index: 4, kind: input, shape index: {}]
  %s5 = inlined_call_operand.hbm [shape: f32[2,4], index: 5, kind: output, shape index: {}]
  %s6 = sld [smem:[#allocation0]]
  $region38: #{tpu_custom_call.1} parent=0
    _
  %s8 = ssub.s32 1, %s6
  %s9 = scalar_select 0, %s8, %s6
  $region1: #{tpu_custom_call.1} parent=0
    #allocation3 [shape = 'u8[1024]{0}', space=vmem, size = 0x400, scoped, tag = 'output window, operand 0, single buffered']
    #allocation4 [shape = 's32[1]{0}', space=sflag, size = 0x4, scoped, tag = 'scoped memory for tpu_custom_call.1']
    %10 = vsyncpa [#allocation4], 0
    // Predicated region
    $region2: #{tpu_custom_call.1} parent=1 // pred_check
      _
    $region3: #{tpu_custom_call.1} parent=1 // pred_check_branch
      %12 = sbr.rel (0) target = $region5
    $region4: #{tpu_custom_call.1} parent=1 // pred_region
      _
    $region5: #{tpu_custom_call.1} parent=1 // pred_fallthru
      _
    // Predicated region
    $region6: #{tpu_custom_call.1} parent=1 // pred_check
      _
    $region7: #{tpu_custom_call.1} parent=1 // pred_check_branch
      %14 = sbr.rel (0) target = $region9
    $region8: #{tpu_custom_call.1} parent=1 // pred_region
      _
    $region9: #{tpu_custom_call.1} parent=1 // pred_fallthru
      _
    // Predicated region
    $region10: #{tpu_custom_call.1} parent=1 // pred_check
      _
    $region11: #{tpu_custom_call.1} parent=1 // pred_check_branch
      %16 = sbr.rel (0) target = $region13
    $region12: #{tpu_custom_call.1} parent=1 // pred_region
      _
    $region13: #{tpu_custom_call.1} parent=1 // pred_fallthru
      _
    // Predicated region
    $region14: #{tpu_custom_call.1} parent=1 // pred_check
      _
    $region15: #{tpu_custom_call.1} parent=1 // pred_check_branch
      %18 = sbr.rel (0) target = $region17
    $region16: #{tpu_custom_call.1} parent=1 // pred_region
      _
    $region17: #{tpu_custom_call.1} parent=1 // pred_fallthru
      _
    // Predicated region
    $region18: #{tpu_custom_call.1} parent=1 // pred_check
      _
    $region19: #{tpu_custom_call.1} parent=1 // pred_check_branch
      %20 = sbr.rel (0) target = $region21
    $region20: #{tpu_custom_call.1} parent=1 // pred_region
      _
    $region21: #{tpu_custom_call.1} parent=1 // pred_fallthru
      _
    %p21 = scmp.eq.s32.totalorder 0, 0
    // Predicated region
    $region22: #{tpu_custom_call.1} parent=1 // pred_check
      %p22 = pneg %p21
    $region23: #{tpu_custom_call.1} parent=1 // pred_check_branch
      %24 = sbr.rel (%p22) target = $region25
    $region24: #{tpu_custom_call.1} parent=1 // pred_region
      %vm25 = vcmask 25600
      %26 = vst.msk [vmem:[#allocation2] sm:$0x3] %vm25, 0.0
    $region25: #{tpu_custom_call.1} parent=1 // pred_fallthru
      _
    %v27 = vld [vmem:[%s0] sm:$0xff]
    %v28 = vld [vmem:[%s0 + $0x8] sm:$0xff]
    %v29 = vld [vmem:[#allocation2] sm:$0x3]
    %32 = vst [vmem:[#allocation1] ss:$2 sm:$0xff] %v27
    %v33 = vld.sshfl [vmem:[#allocation1] sm:$0xff pattern:$0x75316420]
    %v34 = vld.sshfl [vmem:[#allocation1 + $0x8] sm:$0xff pattern:$0x75316420]
    %s35 = scalar_lea.vmem [#allocation1], 16
    %36 = vst [vmem:[%s35] ss:$2 sm:$0xff] %v28
    %v37 = vld.sshfl [vmem:[#allocation1 + $0x10] sm:$0xff pattern:$0x75316420]
    %v38 = vld.sshfl [vmem:[#allocation1 + $0x18] sm:$0xff pattern:$0x75316420]
    %vm43 = vcmask 1043456
    %v44 = vsel %vm43, %v33, 0.0
    %v45 = vsel %vm43, %v34, 0.0
    %v46 = vadd.f32 %v44, %v45
    %47 = vadd.xlane.f32.xlu0 %v46
    %v48 = vpop.xlane.xlu0 %47
    %v49 = vsel %vm43, %v37, 0.0
    %v50 = vsel %vm43, %v38, 0.0
    %v51 = vadd.f32 %v49, %v50
    %52 = vadd.xlane.f32.xlu0 %v51
    %v53 = vpop.xlane.xlu0 %52
    %v56 = vlaneseq
    %v57 = vand.u32 %v56, 127
    %v58 = vperm.slane %v48, %v57
    %v59 = vperm.slane %v53, %v57
    %vm60 = vcmask 1041409
    %v61 = vsel %vm60, %v59, %v58
    %v63 = vadd.f32 %v29, %v61
    %vm64 = vcmask 25600
    %65 = vst.msk [vmem:[#allocation2] sm:$0x3] %vm64, %v63
    // Predicated region
    $region26: #{tpu_custom_call.1} parent=1 // pred_check
      %p66 = pneg %p21
    $region27: #{tpu_custom_call.1} parent=1 // pred_check_branch
      %68 = sbr.rel (%p66) target = $region29
    $region28: #{tpu_custom_call.1} parent=1 // pred_region
      %v69 = vld [vmem:[#allocation2] sm:$0x3]
      %v70 = vmul.f32 %v69, 0.00390625
      %v71 = vld [vmem:[%s1] sm:$0xff]
      %v72 = vld [vmem:[%s1 + $0x8] sm:$0xff]
      %v73 = vld [vmem:[%s2] sm:$0x1]
      %v75 = vperm.slane %v73, 0
      %vm77 = vcmask 31744
      %v79 = vsel %vm77, %v70, 0
      %v82 = vsel %vm77, %v71, 0
      %v85 = vsel %vm77, %v72, 0
      %87 = vmatpush.xpose.msra.mxu0 0.0
      %88 = vmatpush.xpose.msra.mxu0 0.0
      %89 = vmatpush.xpose.msra.mxu0 0.0
      %90 = vmatpush.xpose.msra.mxu0 0.0
      %91 = vmatpush.xpose.msra.mxu0 0.0
      %92 = vmatpush.xpose.msra.mxu0 0.0
      %93 = vmatpush.xpose.msra.mxu0 0.0
      %94 = vmatpush.xpose.msra.mxu0 0.0
      %95 = vmatpush.xpose.msra.mxu0 0.0
      %96 = vmatpush.xpose.msra.mxu0 0.0
      %97 = vmatpush.xpose.msra.mxu0 0.0
      %98 = vmatpush.xpose.msra.mxu0 0.0
      %99 = vmatpush.xpose.msra.mxu0 0.0
      %100 = vmatpush.xpose.msra.mxu0 0.0
      %101 = vmatpush.xpose.msra.mxu0 %v85
      %102 = vmatpush.xpose.msra.mxu0 %v82
      %103 = vmatmul.f32.gmra.mxu0 %v79
      %v104 = vpop.f32.mrf.mxu0
      %v105 = vadd.f32 %v75, %v104
      %106 = vdwg.mxu0
      %v107 = vxor.u32 %v105, 2147483648
      %v108 = vmul.f32 %v107, 1.442695
      %v109 = vpow.pop %v108
      %v110 = vadd.f32 %v109, 1.0
      %v111 = vrcp.pop %v110
      %v112 = vmul.f32 %v110, %v111
      %v113 = vsub.f32 1.0, %v112
      %v114 = vmul.f32 %v111, %v113
      %v115 = vadd.f32 %v111, %v114
      %vm116 = vweird.f32 %v110
      %vm117 = vweird.f32 %v111
      %vm118 = vmor %vm116, %vm117
      %v119 = vsel %vm118, %v111, %v115
      %v120 = vand.u32 2147483647, %v110
      %vm121 = vcmp.eq.f32.partialorder %v120, 8.507059e+37
      %v122 = vand.u32 %v110, 2147483648
      %v123 = vor.u32 1.1754944e-38, %v122
      %v124 = vsel %vm121, %v123, %v119
      %v125 = vmul.f32 1.0, %v124
      %v126 = vmul.f32 %v105, %v125
      %v127 = vld [vmem:[%s3] sm:$0xf]
      %v128 = vld [vmem:[%s4] sm:$0x1]
      %v130 = vperm.slane %v128, 0
      %vm132 = vcmask 130048
      %v134 = vsel %vm132, %v126, 0
      %v137 = vsel %vm132, %v127, 0
      %139 = vmatpush.xpose.msra.mxu0 0.0
      %140 = vmatpush.xpose.msra.mxu0 0.0
      %141 = vmatpush.xpose.msra.mxu0 0.0
      %142 = vmatpush.xpose.msra.mxu0 0.0
      %143 = vmatpush.xpose.msra.mxu0 0.0
      %144 = vmatpush.xpose.msra.mxu0 0.0
      %145 = vmatpush.xpose.msra.mxu0 0.0
      %146 = vmatpush.xpose.msra.mxu0 0.0
      %147 = vmatpush.xpose.msra.mxu0 0.0
      %148 = vmatpush.xpose.msra.mxu0 0.0
      %149 = vmatpush.xpose.msra.mxu0 0.0
      %150 = vmatpush.xpose.msra.mxu0 0.0
      %151 = vmatpush.xpose.msra.mxu0 0.0
      %152 = vmatpush.xpose.msra.mxu0 0.0
      %153 = vmatpush.xpose.msra.mxu0 0.0
      %154 = vmatpush.xpose.msra.mxu0 %v137
      %155 = vmatmul.f32.gmra.mxu0 %v134
      %v156 = vpop.f32.mrf.mxu0
      %v157 = vadd.f32 %v130, %v156
      %158 = vdwg.mxu0
      %v159 = vxor.u32 %v157, 2147483648
      %v160 = vmul.f32 %v159, 1.442695
      %v161 = vpow.pop %v160
      %v162 = vadd.f32 %v161, 1.0
      %v163 = vrcp.pop %v162
      %v164 = vmul.f32 %v162, %v163
      %v165 = vsub.f32 1.0, %v164
      %v166 = vmul.f32 %v163, %v165
      %v167 = vadd.f32 %v163, %v166
      %vm168 = vweird.f32 %v162
      %vm169 = vweird.f32 %v163
      %vm170 = vmor %vm168, %vm169
      %v171 = vsel %vm170, %v163, %v167
      %v172 = vand.u32 2147483647, %v162
      %vm173 = vcmp.eq.f32.partialorder %v172, 8.507059e+37
      %v174 = vand.u32 %v162, 2147483648
      %v175 = vor.u32 1.1754944e-38, %v174
      %v176 = vsel %vm173, %v175, %v171
      %v177 = vmul.f32 1.0, %v176
      %178 = vst.msk [vmem:[#allocation3] sm:$0x3] %vm64, %v177
    $region29: #{tpu_custom_call.1} parent=1 // pred_fallthru
      _
    // Predicated region
    $region30: #{tpu_custom_call.1} parent=1 // pred_check
      _
    $region31: #{tpu_custom_call.1} parent=1 // pred_check_branch
      %180 = sbr.rel (0) target = $region33
    $region32: #{tpu_custom_call.1} parent=1 // pred_region
      %182 = vsyncadd [#allocation4], 0
      %s184 = sshll.u32 [#allocation3], 4
      %s185 = int_to_ptr.vmem [resolvable:$true] %s184
      %s186 = sshll.u32 %s5, 4
      %s187 = int_to_ptr.hbm [resolvable:$true] %s186
      %189 = dma.vmem_to_hbm [thread:$0]  %s185, 32, %s187, [#allocation4]
    $region33: #{tpu_custom_call.1} parent=1 // pred_fallthru
      _
    // Predicated region
    $region34: #{tpu_custom_call.1} parent=1 // pred_check
      _
    $region35: #{tpu_custom_call.1} parent=1 // pred_check_branch
      %191 = sbr.rel (0) target = $region37
    $region36: #{tpu_custom_call.1} parent=1 // pred_region
      %193 = dma.done [#allocation4], 32
    $region37: #{tpu_custom_call.1} parent=1 // pred_fallthru
      _
    %194 = vsyncpa [#allocation4], 1

</llo_original>
